<compile_context>
chip_gen: v6e
topology: v6e:2x2x1
jax: 0.10.0
libtpu: 0.0.40
codegen_flags: <defaults>
</compile_context>

<pallas_src>
import jax
import jax.numpy as jnp
from jax.experimental import pallas as pl
from jax.experimental.pallas import tpu as pltpu


def _two_layer_nn_kernel(x_ref, w1_ref, b1_ref, w2_ref, b2_ref, o_ref):
    """One batch tile.

    x  : [TM, I]  compute dtype (bf16)
    w1 : [I, H]   (pre-transposed in the wrapper)
    b1 : [1, H]   f32
    w2 : [H, O]   (pre-transposed in the wrapper)
    b2 : [1, O]   f32
    """
    # Layer 1 on the MXU, f32 accumulation.
    h = jnp.dot(x_ref[...], w1_ref[...], preferred_element_type=jnp.float32)  # [TM, H]
    # Bias + ReLU on the f32 accumulator (VPU), then drop to the compute dtype
    # for the second MXU pass.
    h = jnp.maximum(h + b1_ref[...], 0.0).astype(w2_ref.dtype)
    # Layer 2 on the MXU, f32 accumulation; bias on the f32 accumulator.
    y = jnp.dot(h, w2_ref[...], preferred_element_type=jnp.float32)           # [TM, O]
    o_ref[...] = (y + b2_ref[...]).astype(o_ref.dtype)


def _round_up(x, m):
    return ((x + m - 1) // m) * m


def _vmem_capacity_bytes(default=64 * 1024 * 1024):
    """Physical VMEM per TensorCore; falls back to the v7x (smallest) size."""
    try:
        return int(pltpu.get_tpu_info().vmem_capacity_bytes)
    except Exception:
        return default


def _pick_batch_tile(B, I, H, O, *, x_itemsize, out_itemsize, w_itemsize, vmem_bytes):
    """Largest MXU-aligned batch tile whose pipelined x/out tiles fit next to the
    single-buffered resident weights; prefers >= 2 tiles for large batches so
    ("parallel",) can shard across both v7x TensorCores."""
    resident = (I * H + H * O) * w_itemsize + (H + O) * 4     # Buffered(1) weights + f32 biases
    per_row = 2 * (I * x_itemsize + O * out_itemsize)         # double-buffered x + out tile rows
    budget = int(0.7 * vmem_bytes) - resident                 # headroom for vregs / internal scratch
    cap = max(budget // per_row, 8) if per_row > 0 else B
    if B >= 1024:
        half = _round_up(pl.cdiv(B, 2), 256)                  # two MXU-aligned tiles for megacore
        if half <= cap:
            return half
    if B <= cap:
        return B
    if cap >= 256:
        return (cap // 256) * 256
    return max((cap // 8) * 8, 8)


def two_layer_nn_forward(x, w1, b1, w2, b2, *,
                         compute_dtype=jnp.bfloat16, block_batch=None, x_buffers=2):
    """Forward pass of TwoLayerNN:  relu(x @ W1^T + b1) @ W2^T + b2.

    Args (PyTorch nn.Linear layouts):
      x: [B, I]   w1: [H, I]   b1: [H]   w2: [O, H]   b2: [O]
    Returns [B, O] in x.dtype.

    At real sizes keep I/H multiples of 128 (256 on v6e/v7x) and O a multiple
    of 128 so the output stays lane-dense (unmasked stores) and the MXU is not
    padding-dominated; at the toy shapes in __main__ everything is per-step
    overhead, so these only matter for the general-size path.
    """
    B, I = x.shape
    H, I2 = w1.shape
    O, H2 = w2.shape
    assert I2 == I and H2 == H

    # bf16 operands halve HBM traffic and hit the fast MXU path; accumulation
    # stays f32 inside the kernel, biases stay f32.
    xc = x.astype(compute_dtype)
    w1t = w1.T.astype(compute_dtype)                 # [I, H] one-time HBM relayout
    w2t = w2.T.astype(compute_dtype)                 # [H, O]
    b1r = b1.astype(jnp.float32).reshape(1, H)
    b2r = b2.astype(jnp.float32).reshape(1, O)

    out_dtype = x.dtype
    out_itemsize = jnp.dtype(out_dtype).itemsize
    vmem_bytes = _vmem_capacity_bytes()

    tm = block_batch if block_batch is not None else _pick_batch_tile(
        B, I, H, O,
        x_itemsize=xc.dtype.itemsize, out_itemsize=out_itemsize,
        w_itemsize=w1t.dtype.itemsize, vmem_bytes=vmem_bytes)
    tm = min(tm, B)
    grid = (pl.cdiv(B, tm),)

    # Scoped-VMEM limit from actual buffer math (default scoped limit is only
    # 16/32 MiB, far below physical 128/128/64 MiB).
    resident_bytes = (I * H + H * O) * w1t.dtype.itemsize + (H + O) * 4
    tile_bytes = x_buffers * tm * I * xc.dtype.itemsize + 2 * tm * O * out_itemsize
    vmem_limit = min(max(2 * (resident_bytes + tile_bytes), 32 * 1024 * 1024),
                     int(0.9 * vmem_bytes))

    # Advisory cost so XLA schedules the surrounding casts/transposes sensibly.
    cost = pl.CostEstimate(
        flops=2 * B * I * H + 2 * B * H * O,
        transcendentals=0,
        bytes_accessed=(B * I * xc.dtype.itemsize
                        + (I * H + H * O) * w1t.dtype.itemsize
                        + (H + O) * 4
                        + B * O * out_itemsize),
    )

    # Grid-invariant operands: VMEM-resident, single-buffered.
    resident = lambda shape: pl.BlockSpec(
        shape, lambda i: (0,) * len(shape), pipeline_mode=pl.Buffered(1))

    return pl.pallas_call(
        _two_layer_nn_kernel,
        out_shape=jax.ShapeDtypeStruct((B, O), out_dtype),
        grid=grid,
        in_specs=[
            pl.BlockSpec((tm, I), lambda i: (i, 0),
                         pipeline_mode=pl.Buffered(x_buffers)),   # pipelined x tile
            resident((I, H)),                                     # W1^T
            resident((1, H)),                                     # b1
            resident((H, O)),                                     # W2^T
            resident((1, O)),                                     # b2
        ],
        out_specs=pl.BlockSpec((tm, O), lambda i: (i, 0)),
        compiler_params=pltpu.CompilerParams(
            dimension_semantics=("parallel",),   # batch tiles shard across v7x cores
            vmem_limit_bytes=int(vmem_limit),
        ),
        cost_estimate=cost,
    )(xc, w1t, b1r, w2t, b2r)


def _init_linear(key, out_features, in_features, dtype=jnp.float32):
    """Deterministic init matching nn.Linear's U(-1/sqrt(fan_in), 1/sqrt(fan_in))."""
    kw, kb = jax.random.split(key)
    bound = 1.0 / jnp.sqrt(jnp.asarray(in_features, dtype))
    w = jax.random.uniform(kw, (out_features, in_features), dtype, -bound, bound)
    b = jax.random.uniform(kb, (out_features,), dtype, -bound, bound)
    return w, b


def _reference(x, w1, b1, w2, b2):
    """Mirrors the kernel's bf16 operand/activation rounding with f32 accumulation."""
    f32 = jnp.float32
    hp = jax.lax.Precision.HIGHEST
    xb = x.astype(jnp.bfloat16).astype(f32)
    w1b = w1.astype(jnp.bfloat16).astype(f32)
    w2b = w2.astype(jnp.bfloat16).astype(f32)
    h = jnp.maximum(jnp.dot(xb, w1b.T, precision=hp) + b1, 0.0)
    h = h.astype(jnp.bfloat16).astype(f32)
    return jnp.dot(h, w2b.T, precision=hp) + b2


if __name__ == "__main__":
    # Small shapes consistent with the module: input=16, hidden=32, output=4.
    input_size, hidden_size, output_size = 16, 32, 4

    key = jax.random.PRNGKey(0)
    kx, k1, k2 = jax.random.split(key, 3)
    w1, b1 = _init_linear(k1, hidden_size, input_size)
    w2, b2 = _init_linear(k2, output_size, hidden_size)

    # Case 1: toy batch, single tile.
    batch = 8
    x = jax.random.normal(kx, (batch, input_size), jnp.float32)
    out = jax.block_until_ready(two_layer_nn_forward(x, w1, b1, w2, b2))
    ref = _reference(x, w1, b1, w2, b2)
    assert out.shape == (batch, output_size)
    assert out.dtype == x.dtype
    assert jnp.allclose(out, ref, atol=1e-4, rtol=1e-4), \
        float(jnp.max(jnp.abs(out - ref)))

    # Case 2: ragged batch (B % tile != 0) exercising the padded trailing tile.
    batch2 = 20
    x2 = jax.random.normal(kx, (batch2, input_size), jnp.float32)
    out2 = jax.block_until_ready(
        two_layer_nn_forward(x2, w1, b1, w2, b2, block_batch=8))
    ref2 = _reference(x2, w1, b1, w2, b2)
    assert out2.shape == (batch2, output_size)
    assert jnp.allclose(out2, ref2, atol=1e-4, rtol=1e-4), \
        float(jnp.max(jnp.abs(out2 - ref2)))

    print("KERNEL_OK")
</pallas_src>

<mosaic_0001>
module attributes {stable_mosaic.version = 11 : i64} {
  func.func @_two_layer_nn_kernel(%arg0: i32, %arg1: memref<8x16xbf16, #tpu.memory_space<vmem>>, %arg2: memref<16x32xbf16, #tpu.memory_space<vmem>>, %arg3: memref<1x32xf32, #tpu.memory_space<vmem>>, %arg4: memref<32x4xbf16, #tpu.memory_space<vmem>>, %arg5: memref<1x4xf32, #tpu.memory_space<vmem>>, %arg6: memref<8x4xf32, #tpu.memory_space<vmem>>) attributes {dimension_semantics = [#tpu.dimension_semantics<parallel>], iteration_bounds = array<i64: 1>, scalar_prefetch = 0 : i64, scratch_operands = 0 : i64, tpu.core_type = #tpu.core_type<tc>, window_params = [{pipeline_mode = #tpu.pipeline_mode<double_buffered>, transform_indices = @transform_0, window_bounds = array<i64: 8, 16>}, {pipeline_mode = #tpu.pipeline_mode<synchronous>, transform_indices = @transform_1, window_bounds = array<i64: 16, 32>}, {pipeline_mode = #tpu.pipeline_mode<synchronous>, transform_indices = @transform_2, window_bounds = array<i64: 1, 32>}, {pipeline_mode = #tpu.pipeline_mode<synchronous>, transform_indices = @transform_3, window_bounds = array<i64: 32, 4>}, {pipeline_mode = #tpu.pipeline_mode<synchronous>, transform_indices = @transform_4, window_bounds = array<i64: 1, 4>}, {transform_indices = @transform_5, window_bounds = array<i64: 8, 4>}]} {
    %c0 = arith.constant 0 : index
    %c0_0 = arith.constant 0 : index
    %0 = vector.load %arg1[%c0, %c0_0] : memref<8x16xbf16, #tpu.memory_space<vmem>>, vector<8x16xbf16>
    %c0_1 = arith.constant 0 : index
    %c0_2 = arith.constant 0 : index
    %1 = vector.load %arg2[%c0_1, %c0_2] : memref<16x32xbf16, #tpu.memory_space<vmem>>, vector<16x32xbf16>
    %cst = arith.constant dense<0.000000e+00> : vector<8x32xf32>
    %2 = tpu.matmul %0, %1, %cst {dimension_numbers = #tpu.dot_dimension_numbers<[1], [0], [0], [1], [0, 0, 1, 1], [], []>} : vector<8x16xbf16>, vector<16x32xbf16>, vector<8x32xf32> -> vector<8x32xf32>
    %c0_3 = arith.constant 0 : index
    %c0_4 = arith.constant 0 : index
    %3 = vector.load %arg3[%c0_3, %c0_4] : memref<1x32xf32, #tpu.memory_space<vmem>>, vector<1x32xf32>
    %4 = vector.broadcast %3 : vector<1x32xf32> to vector<8x32xf32>
    %5 = arith.addf %2, %4 : vector<8x32xf32>
    %cst_5 = arith.constant 0.000000e+00 : f32
    %6 = vector.broadcast %cst_5 : f32 to vector<8x32xf32>
    %7 = arith.maximumf %5, %6 : vector<8x32xf32>
    %8 = arith.truncf %7 : vector<8x32xf32> to vector<8x32xbf16>
    %c0_6 = arith.constant 0 : index
    %c0_7 = arith.constant 0 : index
    %9 = vector.load %arg4[%c0_6, %c0_7] : memref<32x4xbf16, #tpu.memory_space<vmem>>, vector<32x4xbf16>
    %cst_8 = arith.constant dense<0.000000e+00> : vector<8x4xf32>
    %10 = tpu.matmul %8, %9, %cst_8 {dimension_numbers = #tpu.dot_dimension_numbers<[1], [0], [0], [1], [0, 0, 1, 1], [], []>} : vector<8x32xbf16>, vector<32x4xbf16>, vector<8x4xf32> -> vector<8x4xf32>
    %c0_9 = arith.constant 0 : index
    %c0_10 = arith.constant 0 : index
    %11 = vector.load %arg5[%c0_9, %c0_10] : memref<1x4xf32, #tpu.memory_space<vmem>>, vector<1x4xf32>
    %12 = vector.broadcast %11 : vector<1x4xf32> to vector<8x4xf32>
    %13 = arith.addf %10, %12 : vector<8x4xf32>
    %c0_11 = arith.constant 0 : index
    %c0_12 = arith.constant 0 : index
    %14 = vector.load %arg6[%c0_11, %c0_12] : memref<8x4xf32, #tpu.memory_space<vmem>>, vector<8x4xf32>
    tpu.vector_store %arg6[%c0_11, %c0_12], %13 {strides = array<i32>} : memref<8x4xf32, #tpu.memory_space<vmem>>, vector<8x4xf32>,
    return
  }
  func.func @transform_0(%arg0: i32) -> (i32, i32) {
    %c0_i32 = arith.constant 0 : i32
    %c0_i32_0 = arith.constant 0 : i32
    return %arg0, %c0_i32 : i32, i32
  }
  func.func @transform_1(%arg0: i32) -> (i32, i32) {
    %c0_i32 = arith.constant 0 : i32
    %c0_i32_0 = arith.constant 0 : i32
    %c0_i32_1 = arith.constant 0 : i32
    return %c0_i32, %c0_i32_0 : i32, i32
  }
  func.func @transform_2(%arg0: i32) -> (i32, i32) {
    %c0_i32 = arith.constant 0 : i32
    %c0_i32_0 = arith.constant 0 : i32
    %c0_i32_1 = arith.constant 0 : i32
    return %c0_i32, %c0_i32_0 : i32, i32
  }
  func.func @transform_3(%arg0: i32) -> (i32, i32) {
    %c0_i32 = arith.constant 0 : i32
    %c0_i32_0 = arith.constant 0 : i32
    %c0_i32_1 = arith.constant 0 : i32
    return %c0_i32, %c0_i32_0 : i32, i32
  }
  func.func @transform_4(%arg0: i32) -> (i32, i32) {
    %c0_i32 = arith.constant 0 : i32
    %c0_i32_0 = arith.constant 0 : i32
    %c0_i32_1 = arith.constant 0 : i32
    return %c0_i32, %c0_i32_0 : i32, i32
  }
  func.func @transform_5(%arg0: i32) -> (i32, i32) {
    %c0_i32 = arith.constant 0 : i32
    %c0_i32_0 = arith.constant 0 : i32
    return %arg0, %c0_i32 : i32, i32
  }
}

</mosaic_0001>

<llo_original>
// kernel: tpu_custom_call.1
$region0: #{tpu_custom_call.1}
  #allocation0 [shape = 'u32[]', space=smem, size = 0x4, offset = 0x4, fixed_abs, tag = 'smem constant byte address 0x4 - core index']
  #allocation1 [shape = 'u32[144,128]{1,0:T(1,128)}', space=vmem, size = 0x12000, scoped, tag = 'internal scratch']
  %s0 = inlined_call_operand.vmem [shape: bf16[8,16], index: 0, kind: input, shape index: {}]
  %s1 = inlined_call_operand.vmem [shape: bf16[16,32], index: 1, kind: input, shape index: {}]
  %s2 = inlined_call_operand.vmem [shape: f32[1,32], index: 2, kind: input, shape index: {}]
  %s3 = inlined_call_operand.vmem [shape: bf16[32,4], index: 3, kind: input, shape index: {}]
  %s4 = inlined_call_operand.vmem [shape: f32[1,4], index: 4, kind: input, shape index: {}]
  %s5 = inlined_call_operand.vmem [shape: f32[8,4], index: 5, kind: output, shape index: {}]
  %s6 = sld [smem:[#allocation0]]
  $region30: #{tpu_custom_call.1} parent=0
    _
  %s8 = ssub.s32 1, %s6
  %s9 = scalar_select 0, %s8, %s6
  // Predicated region
  $region2: #{tpu_custom_call.1} parent=0 // pred_check
    _
  $region3: #{tpu_custom_call.1} parent=0 // pred_check_branch
    %11 = sbr.rel (0) target = $region5
  $region4: #{tpu_custom_call.1} parent=0 // pred_region
    _
  $region5: #{tpu_custom_call.1} parent=0 // pred_fallthru
    _
  // Predicated region
  $region6: #{tpu_custom_call.1} parent=0 // pred_check
    _
  $region7: #{tpu_custom_call.1} parent=0 // pred_check_branch
    %13 = sbr.rel (0) target = $region9
  $region8: #{tpu_custom_call.1} parent=0 // pred_region
    _
  $region9: #{tpu_custom_call.1} parent=0 // pred_fallthru
    _
  // Predicated region
  $region10: #{tpu_custom_call.1} parent=0 // pred_check
    _
  $region11: #{tpu_custom_call.1} parent=0 // pred_check_branch
    %15 = sbr.rel (0) target = $region13
  $region12: #{tpu_custom_call.1} parent=0 // pred_region
    _
  $region13: #{tpu_custom_call.1} parent=0 // pred_fallthru
    _
  // Predicated region
  $region14: #{tpu_custom_call.1} parent=0 // pred_check
    _
  $region15: #{tpu_custom_call.1} parent=0 // pred_check_branch
    %17 = sbr.rel (0) target = $region17
  $region16: #{tpu_custom_call.1} parent=0 // pred_region
    _
  $region17: #{tpu_custom_call.1} parent=0 // pred_fallthru
    _
  // Predicated region
  $region18: #{tpu_custom_call.1} parent=0 // pred_check
    _
  $region19: #{tpu_custom_call.1} parent=0 // pred_check_branch
    %19 = sbr.rel (0) target = $region21
  $region20: #{tpu_custom_call.1} parent=0 // pred_region
    _
  $region21: #{tpu_custom_call.1} parent=0 // pred_fallthru
    _
  %v21 = vld [vmem:[%s0] sm:$0xf]
  %v22 = vld [vmem:[%s1] sm:$0xf]
  %v23 = vld [vmem:[%s1 + $0x4] sm:$0xf]
  %v24 = vld [vmem:[%s2] sm:$0x1]
  %v26 = vlaneseq
  %v27 = vshrl.u32 %v26, 7
  %v28 = vsub.s32 0, %v27
  %v29 = vrot.slane %v24, %v28
  %v33 = vunpack.c.l.b16 %v22
  %v34 = vunpack.c.l.b16 %v23
  %v35 = vpack.c.b16 %v34, %v33
  %vm37 = vcmask 130048
  %v39 = vsel %vm37, %v21, 0
  %41 = vmatprep.subr.bf16.mxu0 0
  %42 = vmatpush1.bf16.msra.mxu0 0
  %43 = vmatprep.subr.bf16.mxu0 0
  %44 = vmatpush1.bf16.msra.mxu0 0
  %45 = vmatprep.subr.bf16.mxu0 0
  %46 = vmatpush1.bf16.msra.mxu0 0
  %47 = vmatprep.subr.bf16.mxu0 0
  %48 = vmatpush1.bf16.msra.mxu0 0
  %49 = vmatprep.subr.bf16.mxu0 0
  %50 = vmatpush1.bf16.msra.mxu0 0
  %51 = vmatprep.subr.bf16.mxu0 0
  %52 = vmatpush1.bf16.msra.mxu0 0
  %53 = vmatprep.subr.bf16.mxu0 0
  %54 = vmatpush1.bf16.msra.mxu0 0
  %55 = vmatprep.subr.bf16.mxu0 0
  %56 = vmatpush1.bf16.msra.mxu0 %v35
  %57 = vmatprep.subr.bf16.mxu0 0
  %58 = vmatpush2.bf16.msra.mxu0 0
  %59 = vmatprep.subr.bf16.mxu0 0
  %60 = vmatpush2.bf16.msra.mxu0 0
  %61 = vmatprep.subr.bf16.mxu0 0
  %62 = vmatpush2.bf16.msra.mxu0 0
  %63 = vmatprep.subr.bf16.mxu0 0
  %64 = vmatpush2.bf16.msra.mxu0 0
  %65 = vmatprep.subr.bf16.mxu0 0
  %66 = vmatpush2.bf16.msra.mxu0 0
  %67 = vmatprep.subr.bf16.mxu0 0
  %68 = vmatpush2.bf16.msra.mxu0 0
  %69 = vmatprep.subr.bf16.mxu0 0
  %70 = vmatpush2.bf16.msra.mxu0 0
  %71 = vmatprep.subr.bf16.mxu0 0
  %72 = vmatpush2.bf16.msra.mxu0 0
  %73 = vmatprep.mubr.bf16.mxu0 0
  %74 = vmatmul.mubr.bf16.gmra.mxu0 %v39
  %v75 = vpop.f32.mrf.mxu0
  %v76 = vadd.f32 %v29, %v75
  %v77 = vpop.f32.mrf.mxu0
  %v78 = vpop.f32.mrf.mxu0
  %v79 = vpop.f32.mrf.mxu0
  %80 = vdwg.mxu0
  %v81 = vmax.f32 %v76, 0.0
  %v82 = vpack.c.bf16 %v81, %v81
  %v83 = vld [vmem:[%s3] sm:$0xf]
  %v84 = vld [vmem:[%s3 + $0x4] sm:$0xf]
  %v85 = vld [vmem:[%s3 + $0x8] sm:$0xf]
  %v86 = vld [vmem:[%s3 + $0xc] sm:$0xf]
  %v87 = vld [vmem:[%s4] sm:$0x1]
  %v89 = vlaneseq
  %v90 = vshrl.u32 %v89, 7
  %v91 = vsub.s32 0, %v90
  %v92 = vrot.slane %v87, %v91
  %v98 = vunpack.c.l.b16 %v83
  %v99 = vunpack.c.l.b16 %v84
  %v100 = vunpack.c.l.b16 %v85
  %v101 = vunpack.c.l.b16 %v86
  %v102 = vpack.c.b16 %v99, %v98
  %v103 = vpack.c.b16 %v101, %v100
  %vm106 = vcmask 261120
  %v108 = vsel %vm106, %v82, 0
  %110 = vmatprep.subr.bf16.mxu0 0
  %111 = vmatpush1.bf16.msra.mxu0 0
  %112 = vmatprep.subr.bf16.mxu0 0
  %113 = vmatpush1.bf16.msra.mxu0 0
  %114 = vmatprep.subr.bf16.mxu0 0
  %115 = vmatpush1.bf16.msra.mxu0 0
  %116 = vmatprep.subr.bf16.mxu0 0
  %117 = vmatpush1.bf16.msra.mxu0 0
  %118 = vmatprep.subr.bf16.mxu0 0
  %119 = vmatpush1.bf16.msra.mxu0 0
  %120 = vmatprep.subr.bf16.mxu0 0
  %121 = vmatpush1.bf16.msra.mxu0 0
  %122 = vmatprep.subr.bf16.mxu0 0
  %123 = vmatpush1.bf16.msra.mxu0 %v103
  %124 = vmatprep.subr.bf16.mxu0 0
  %125 = vmatpush1.bf16.msra.mxu0 %v102
  %126 = vmatprep.subr.bf16.mxu0 0
  %127 = vmatpush2.bf16.msra.mxu0 0
  %128 = vmatprep.subr.bf16.mxu0 0
  %129 = vmatpush2.bf16.msra.mxu0 0
  %130 = vmatprep.subr.bf16.mxu0 0
  %131 = vmatpush2.bf16.msra.mxu0 0
  %132 = vmatprep.subr.bf16.mxu0 0
  %133 = vmatpush2.bf16.msra.mxu0 0
  %134 = vmatprep.subr.bf16.mxu0 0
  %135 = vmatpush2.bf16.msra.mxu0 0
  %136 = vmatprep.subr.bf16.mxu0 0
  %137 = vmatpush2.bf16.msra.mxu0 0
  %138 = vmatprep.subr.bf16.mxu0 0
  %139 = vmatpush2.bf16.msra.mxu0 0
  %140 = vmatprep.subr.bf16.mxu0 0
  %141 = vmatpush2.bf16.msra.mxu0 0
  %142 = vmatprep.mubr.bf16.mxu0 0
  %143 = vmatmul.mubr.bf16.gmra.mxu0 %v108
  %v144 = vpop.f32.mrf.mxu0
  %v145 = vadd.f32 %v92, %v144
  %v146 = vpop.f32.mrf.mxu0
  %v147 = vpop.f32.mrf.mxu0
  %v148 = vpop.f32.mrf.mxu0
  %149 = vdwg.mxu0
  %vm150 = vcmask 31744
  %151 = vst.msk [vmem:[%s5] sm:$0xff] %vm150, %v145
  // Predicated region
  $region22: #{tpu_custom_call.1} parent=0 // pred_check
    _
  $region23: #{tpu_custom_call.1} parent=0 // pred_check_branch
    %153 = sbr.rel (0) target = $region25
  $region24: #{tpu_custom_call.1} parent=0 // pred_region
    _
  $region25: #{tpu_custom_call.1} parent=0 // pred_fallthru
    _
  // Predicated region
  $region26: #{tpu_custom_call.1} parent=0 // pred_check
    _
  $region27: #{tpu_custom_call.1} parent=0 // pred_check_branch
    %155 = sbr.rel (0) target = $region29
  $region28: #{tpu_custom_call.1} parent=0 // pred_region
    _
  $region29: #{tpu_custom_call.1} parent=0 // pred_fallthru
    _

</llo_original>
